<compile_context>
chip_gen: v7x
topology: tpu7x:2x2x1
jax: 0.10.0
libtpu: 0.0.40
codegen_flags: <defaults>
</compile_context>

<pallas_src>
import functools

import jax
import jax.numpy as jnp
from jax.experimental import pallas as pl
from jax.experimental.pallas import tpu as pltpu


def _convbn1d_kernel(x_ref, w_ref, g_ref, b_ref, o_ref, patches_ref, *,
                     n_batch, cin, length, ksize, pad, eps, out_relu, leaky):
    # x_ref      : (N, Cin, L)        input, native NCL layout
    # w_ref      : (Cout, ksize*Cin)  flattened weight, column j = k*Cin + c  <->  w[o, c, k]
    # g_ref/b_ref: (Cout, 1)          BN gamma / beta
    # o_ref      : (Cout, N*L)        channels-major output
    # patches_ref: (ksize*Cin, N*L)   VMEM scratch holding the zero-padded im2col matrix
    patches_ref[...] = jnp.zeros_like(patches_ref)

    # Build the im2col matrix with static sub-slice stores; the zeroed scratch supplies the
    # conv halo (padding) so the input never needs a padded HBM copy.
    for n in range(n_batch):
        xn = x_ref[n]                                    # (Cin, L)
        for k in range(ksize):
            s = k - pad                                  # tap shift in [-pad, ksize-1-pad]
            width = length - abs(s)
            lo_out = max(0, -s)                          # first valid output position
            lo_in = max(0, s)                            # first contributing input column
            patches_ref[k * cin:(k + 1) * cin,
                        n * length + lo_out:n * length + lo_out + width] = (
                xn[:, lo_in:lo_in + width])

    # One MXU matmul: (Cout, ksize*Cin) x (ksize*Cin, N*L) -> (Cout, N*L).
    y = jnp.dot(w_ref[...], patches_ref[...], preferred_element_type=jnp.float32)

    # BatchNorm1d (training-mode batch statistics per channel over N*L, biased variance),
    # computed in f32 with a centered second moment.
    mean = jnp.mean(y, axis=1, keepdims=True)            # (Cout, 1)
    cen = y - mean
    var = jnp.mean(cen * cen, axis=1, keepdims=True)     # (Cout, 1)
    out = cen * (g_ref[...] * jax.lax.rsqrt(var + eps)) + b_ref[...]

    if out_relu:
        out = jnp.where(out > 0, out, 0.1 * out) if leaky else jnp.maximum(out, 0.0)
    o_ref[...] = out.astype(o_ref.dtype)


def convbn1d_forward(x, conv_w, bn_gamma, bn_beta, *, stride=1, padding=4, groups=1,
                     out_relu=False, leaky=False, lbda=None, perm=None, eps=1e-5):
    """Matches ConvBN1d.forward (training-mode BN). x: (N, Cin, L) -> (N, Cout, L)."""
    n, cin, length = x.shape
    cout, cin_w, ksize = conv_w.shape
    # TODO(synk): groups>1 and stride>1 variants are not implemented (module defaults are 1).
    assert groups == 1 and stride == 1 and cin_w == cin
    assert ksize - 1 == 2 * padding and length > padding  # 'same'-length conv (module defaults)

    # Flatten the weight so that column j = k*Cin + c matches the im2col row ordering.
    w_flat = jnp.transpose(conv_w, (0, 2, 1)).reshape(cout, ksize * cin).astype(jnp.float32)

    fuse_act = out_relu and (lbda is None)   # with mixup, the activation must follow the mix
    kern = functools.partial(
        _convbn1d_kernel, n_batch=n, cin=cin, length=length, ksize=ksize, pad=padding,
        eps=eps, out_relu=fuse_act, leaky=leaky)

    vmem_spec = pl.BlockSpec(memory_space=pltpu.MemorySpace.VMEM)
    y = pl.pallas_call(
        kern,
        out_shape=jax.ShapeDtypeStruct((cout, n * length), jnp.float32),
        in_specs=[vmem_spec, vmem_spec, vmem_spec, vmem_spec],
        out_specs=vmem_spec,
        scratch_shapes=[pltpu.VMEM((ksize * cin, n * length), jnp.float32)],
    )(x.astype(jnp.float32), w_flat,
      bn_gamma.reshape(cout, 1).astype(jnp.float32),
      bn_beta.reshape(cout, 1).astype(jnp.float32))

    y = jnp.transpose(y.reshape(cout, n, length), (1, 0, 2))   # back to (N, Cout, L)

    if lbda is not None:                                       # mixup branch of the module
        y = lbda * y + (1.0 - lbda) * y[perm]
        if out_relu:
            y = jnp.where(y > 0, y, 0.1 * y) if leaky else jnp.maximum(y, 0.0)
    # TODO(synk): BN running-stat tracking (eval mode) is not implemented; forward uses
    # training-mode batch statistics as in the module's default train() behaviour.
    return y


def convbn1d_reference(x, conv_w, bn_gamma, bn_beta, *, padding=4, out_relu=False,
                       leaky=False, lbda=None, perm=None, eps=1e-5):
    y = jax.lax.conv_general_dilated(
        x, conv_w, window_strides=(1,), padding=((padding, padding),),
        dimension_numbers=("NCH", "OIH", "NCH"))
    mean = jnp.mean(y, axis=(0, 2), keepdims=True)
    var = jnp.var(y, axis=(0, 2), keepdims=True)
    y = (y - mean) * jax.lax.rsqrt(var + eps)
    y = y * bn_gamma[None, :, None] + bn_beta[None, :, None]
    if lbda is not None:
        y = lbda * y + (1.0 - lbda) * y[perm]
    if out_relu:
        y = jnp.where(y > 0, y, 0.1 * y) if leaky else jnp.maximum(y, 0.0)
    return y


if __name__ == "__main__":
    key = jax.random.PRNGKey(0)
    k1, k2, k3, k4 = jax.random.split(key, 4)

    N, CIN, COUT, L, KSIZE, PAD = 2, 4, 8, 16, 9, 4
    x = jax.random.normal(k1, (N, CIN, L), jnp.float32)
    w = 0.1 * jax.random.normal(k2, (COUT, CIN, KSIZE), jnp.float32)      # Conv1d weight (bias=False)
    gamma = 1.0 + 0.1 * jax.random.normal(k3, (COUT,), jnp.float32)       # BN weight
    beta = 0.1 * jax.random.normal(k4, (COUT,), jnp.float32)              # BN bias

    # Default module path: y = bn(conv(x))   (outRelu=False, lbda=None)
    out = jax.block_until_ready(convbn1d_forward(x, w, gamma, beta, padding=PAD))
    ref = convbn1d_reference(x, w, gamma, beta, padding=PAD)
    assert out.shape == (N, COUT, L), out.shape
    assert jnp.allclose(out, ref, atol=1e-3, rtol=1e-3), float(jnp.max(jnp.abs(out - ref)))

    # outRelu=True, leaky=True path (activation fused in-kernel).
    out_lr = jax.block_until_ready(
        convbn1d_forward(x, w, gamma, beta, padding=PAD, out_relu=True, leaky=True))
    ref_lr = convbn1d_reference(x, w, gamma, beta, padding=PAD, out_relu=True, leaky=True)
    assert jnp.allclose(out_lr, ref_lr, atol=1e-3, rtol=1e-3), \
        float(jnp.max(jnp.abs(out_lr - ref_lr)))

    print("KERNEL_OK")
</pallas_src>

<mosaic_0001>
module attributes {stable_mosaic.version = 11 : i64} {
  func.func @_convbn1d_kernel(%arg0: memref<2x4x16xf32, #tpu.memory_space<vmem>>, %arg1: memref<8x36xf32, #tpu.memory_space<vmem>>, %arg2: memref<8x1xf32, #tpu.memory_space<vmem>>, %arg3: memref<8x1xf32, #tpu.memory_space<vmem>>, %arg4: memref<8x32xf32, #tpu.memory_space<vmem>>, %arg5: memref<36x32xf32, #tpu.memory_space<vmem>>) attributes {dimension_semantics = [], scalar_prefetch = 0 : i64, scratch_operands = 1 : i64, tpu.core_type = #tpu.core_type<tc>} {
    %cst = arith.constant 0.000000e+00 : f32
    %0 = vector.broadcast %cst : f32 to vector<36x32xf32>
    %c0 = arith.constant 0 : index
    %c0_0 = arith.constant 0 : index
    %1 = vector.load %arg5[%c0, %c0_0] : memref<36x32xf32, #tpu.memory_space<vmem>>, vector<36x32xf32>
    tpu.vector_store %arg5[%c0, %c0_0], %0 {strides = array<i32>} : memref<36x32xf32, #tpu.memory_space<vmem>>, vector<36x32xf32>,
    %c0_1 = arith.constant 0 : index
    %c0_2 = arith.constant 0 : index
    %c0_3 = arith.constant 0 : index
    %2 = vector.load %arg0[%c0_1, %c0_2, %c0_3] : memref<2x4x16xf32, #tpu.memory_space<vmem>>, vector<1x4x16xf32>
    %3 = vector.shape_cast %2 : vector<1x4x16xf32> to vector<4x16xf32>
    %4 = vector.extract_strided_slice %3 {offsets = [0, 0], sizes = [4, 12], strides = [1, 1]} : vector<4x16xf32> to vector<4x12xf32>
    %c0_4 = arith.constant 0 : index
    %c4 = arith.constant 4 : index
    %5 = vector.load %arg5[%c0_4, %c4] : memref<36x32xf32, #tpu.memory_space<vmem>>, vector<4x12xf32>
    tpu.vector_store %arg5[%c0_4, %c4], %4 {strides = array<i32>} : memref<36x32xf32, #tpu.memory_space<vmem>>, vector<4x12xf32>,
    %6 = vector.extract_strided_slice %3 {offsets = [0, 0], sizes = [4, 13], strides = [1, 1]} : vector<4x16xf32> to vector<4x13xf32>
    %c4_5 = arith.constant 4 : index
    %c3 = arith.constant 3 : index
    %7 = vector.load %arg5[%c4_5, %c3] : memref<36x32xf32, #tpu.memory_space<vmem>>, vector<4x13xf32>
    tpu.vector_store %arg5[%c4_5, %c3], %6 {strides = array<i32>} : memref<36x32xf32, #tpu.memory_space<vmem>>, vector<4x13xf32>,
    %8 = vector.extract_strided_slice %3 {offsets = [0, 0], sizes = [4, 14], strides = [1, 1]} : vector<4x16xf32> to vector<4x14xf32>
    %c8 = arith.constant 8 : index
    %c2 = arith.constant 2 : index
    %9 = vector.load %arg5[%c8, %c2] : memref<36x32xf32, #tpu.memory_space<vmem>>, vector<4x14xf32>
    tpu.vector_store %arg5[%c8, %c2], %8 {strides = array<i32>} : memref<36x32xf32, #tpu.memory_space<vmem>>, vector<4x14xf32>,
    %10 = vector.extract_strided_slice %3 {offsets = [0, 0], sizes = [4, 15], strides = [1, 1]} : vector<4x16xf32> to vector<4x15xf32>
    %c12 = arith.constant 12 : index
    %c1 = arith.constant 1 : index
    %11 = vector.load %arg5[%c12, %c1] : memref<36x32xf32, #tpu.memory_space<vmem>>, vector<4x15xf32>
    tpu.vector_store %arg5[%c12, %c1], %10 {strides = array<i32>} : memref<36x32xf32, #tpu.memory_space<vmem>>, vector<4x15xf32>,
    %c16 = arith.constant 16 : index
    %c0_6 = arith.constant 0 : index
    %12 = vector.load %arg5[%c16, %c0_6] : memref<36x32xf32, #tpu.memory_space<vmem>>, vector<4x16xf32>
    tpu.vector_store %arg5[%c16, %c0_6], %3 {strides = array<i32>} : memref<36x32xf32, #tpu.memory_space<vmem>>, vector<4x16xf32>,
    %13 = vector.extract_strided_slice %3 {offsets = [0, 1], sizes = [4, 15], strides = [1, 1]} : vector<4x16xf32> to vector<4x15xf32>
    %c20 = arith.constant 20 : index
    %c0_7 = arith.constant 0 : index
    %14 = vector.load %arg5[%c20, %c0_7] : memref<36x32xf32, #tpu.memory_space<vmem>>, vector<4x15xf32>
    tpu.vector_store %arg5[%c20, %c0_7], %13 {strides = array<i32>} : memref<36x32xf32, #tpu.memory_space<vmem>>, vector<4x15xf32>,
    %15 = vector.extract_strided_slice %3 {offsets = [0, 2], sizes = [4, 14], strides = [1, 1]} : vector<4x16xf32> to vector<4x14xf32>
    %c24 = arith.constant 24 : index
    %c0_8 = arith.constant 0 : index
    %16 = vector.load %arg5[%c24, %c0_8] : memref<36x32xf32, #tpu.memory_space<vmem>>, vector<4x14xf32>
    tpu.vector_store %arg5[%c24, %c0_8], %15 {strides = array<i32>} : memref<36x32xf32, #tpu.memory_space<vmem>>, vector<4x14xf32>,
    %17 = vector.extract_strided_slice %3 {offsets = [0, 3], sizes = [4, 13], strides = [1, 1]} : vector<4x16xf32> to vector<4x13xf32>
    %c28 = arith.constant 28 : index
    %c0_9 = arith.constant 0 : index
    %18 = vector.load %arg5[%c28, %c0_9] : memref<36x32xf32, #tpu.memory_space<vmem>>, vector<4x13xf32>
    tpu.vector_store %arg5[%c28, %c0_9], %17 {strides = array<i32>} : memref<36x32xf32, #tpu.memory_space<vmem>>, vector<4x13xf32>,
    %19 = vector.extract_strided_slice %3 {offsets = [0, 4], sizes = [4, 12], strides = [1, 1]} : vector<4x16xf32> to vector<4x12xf32>
    %c32 = arith.constant 32 : index
    %c0_10 = arith.constant 0 : index
    %20 = vector.load %arg5[%c32, %c0_10] : memref<36x32xf32, #tpu.memory_space<vmem>>, vector<4x12xf32>
    tpu.vector_store %arg5[%c32, %c0_10], %19 {strides = array<i32>} : memref<36x32xf32, #tpu.memory_space<vmem>>, vector<4x12xf32>,
    %c1_11 = arith.constant 1 : index
    %c0_12 = arith.constant 0 : index
    %c0_13 = arith.constant 0 : index
    %21 = vector.load %arg0[%c1_11, %c0_12, %c0_13] : memref<2x4x16xf32, #tpu.memory_space<vmem>>, vector<1x4x16xf32>
    %22 = vector.shape_cast %21 : vector<1x4x16xf32> to vector<4x16xf32>
    %23 = vector.extract_strided_slice %22 {offsets = [0, 0], sizes = [4, 12], strides = [1, 1]} : vector<4x16xf32> to vector<4x12xf32>
    %c0_14 = arith.constant 0 : index
    %c20_15 = arith.constant 20 : index
    %24 = vector.load %arg5[%c0_14, %c20_15] : memref<36x32xf32, #tpu.memory_space<vmem>>, vector<4x12xf32>
    tpu.vector_store %arg5[%c0_14, %c20_15], %23 {strides = array<i32>} : memref<36x32xf32, #tpu.memory_space<vmem>>, vector<4x12xf32>,
    %25 = vector.extract_strided_slice %22 {offsets = [0, 0], sizes = [4, 13], strides = [1, 1]} : vector<4x16xf32> to vector<4x13xf32>
    %c4_16 = arith.constant 4 : index
    %c19 = arith.constant 19 : index
    %26 = vector.load %arg5[%c4_16, %c19] : memref<36x32xf32, #tpu.memory_space<vmem>>, vector<4x13xf32>
    tpu.vector_store %arg5[%c4_16, %c19], %25 {strides = array<i32>} : memref<36x32xf32, #tpu.memory_space<vmem>>, vector<4x13xf32>,
    %27 = vector.extract_strided_slice %22 {offsets = [0, 0], sizes = [4, 14], strides = [1, 1]} : vector<4x16xf32> to vector<4x14xf32>
    %c8_17 = arith.constant 8 : index
    %c18 = arith.constant 18 : index
    %28 = vector.load %arg5[%c8_17, %c18] : memref<36x32xf32, #tpu.memory_space<vmem>>, vector<4x14xf32>
    tpu.vector_store %arg5[%c8_17, %c18], %27 {strides = array<i32>} : memref<36x32xf32, #tpu.memory_space<vmem>>, vector<4x14xf32>,
    %29 = vector.extract_strided_slice %22 {offsets = [0, 0], sizes = [4, 15], strides = [1, 1]} : vector<4x16xf32> to vector<4x15xf32>
    %c12_18 = arith.constant 12 : index
    %c17 = arith.constant 17 : index
    %30 = vector.load %arg5[%c12_18, %c17] : memref<36x32xf32, #tpu.memory_space<vmem>>, vector<4x15xf32>
    tpu.vector_store %arg5[%c12_18, %c17], %29 {strides = array<i32>} : memref<36x32xf32, #tpu.memory_space<vmem>>, vector<4x15xf32>,
    %c16_19 = arith.constant 16 : index
    %c16_20 = arith.constant 16 : index
    %31 = vector.load %arg5[%c16_19, %c16_20] : memref<36x32xf32, #tpu.memory_space<vmem>>, vector<4x16xf32>
    tpu.vector_store %arg5[%c16_19, %c16_20], %22 {strides = array<i32>} : memref<36x32xf32, #tpu.memory_space<vmem>>, vector<4x16xf32>,
    %32 = vector.extract_strided_slice %22 {offsets = [0, 1], sizes = [4, 15], strides = [1, 1]} : vector<4x16xf32> to vector<4x15xf32>
    %c20_21 = arith.constant 20 : index
    %c16_22 = arith.constant 16 : index
    %33 = vector.load %arg5[%c20_21, %c16_22] : memref<36x32xf32, #tpu.memory_space<vmem>>, vector<4x15xf32>
    tpu.vector_store %arg5[%c20_21, %c16_22], %32 {strides = array<i32>} : memref<36x32xf32, #tpu.memory_space<vmem>>, vector<4x15xf32>,
    %34 = vector.extract_strided_slice %22 {offsets = [0, 2], sizes = [4, 14], strides = [1, 1]} : vector<4x16xf32> to vector<4x14xf32>
    %c24_23 = arith.constant 24 : index
    %c16_24 = arith.constant 16 : index
    %35 = vector.load %arg5[%c24_23, %c16_24] : memref<36x32xf32, #tpu.memory_space<vmem>>, vector<4x14xf32>
    tpu.vector_store %arg5[%c24_23, %c16_24], %34 {strides = array<i32>} : memref<36x32xf32, #tpu.memory_space<vmem>>, vector<4x14xf32>,
    %36 = vector.extract_strided_slice %22 {offsets = [0, 3], sizes = [4, 13], strides = [1, 1]} : vector<4x16xf32> to vector<4x13xf32>
    %c28_25 = arith.constant 28 : index
    %c16_26 = arith.constant 16 : index
    %37 = vector.load %arg5[%c28_25, %c16_26] : memref<36x32xf32, #tpu.memory_space<vmem>>, vector<4x13xf32>
    tpu.vector_store %arg5[%c28_25, %c16_26], %36 {strides = array<i32>} : memref<36x32xf32, #tpu.memory_space<vmem>>, vector<4x13xf32>,
    %38 = vector.extract_strided_slice %22 {offsets = [0, 4], sizes = [4, 12], strides = [1, 1]} : vector<4x16xf32> to vector<4x12xf32>
    %c32_27 = arith.constant 32 : index
    %c16_28 = arith.constant 16 : index
    %39 = vector.load %arg5[%c32_27, %c16_28] : memref<36x32xf32, #tpu.memory_space<vmem>>, vector<4x12xf32>
    tpu.vector_store %arg5[%c32_27, %c16_28], %38 {strides = array<i32>} : memref<36x32xf32, #tpu.memory_space<vmem>>, vector<4x12xf32>,
    %c0_29 = arith.constant 0 : index
    %c0_30 = arith.constant 0 : index
    %40 = vector.load %arg1[%c0_29, %c0_30] : memref<8x36xf32, #tpu.memory_space<vmem>>, vector<8x36xf32>
    %c0_31 = arith.constant 0 : index
    %c0_32 = arith.constant 0 : index
    %41 = vector.load %arg5[%c0_31, %c0_32] : memref<36x32xf32, #tpu.memory_space<vmem>>, vector<36x32xf32>
    %cst_33 = arith.constant dense<0.000000e+00> : vector<8x32xf32>
    %42 = tpu.matmul %40, %41, %cst_33 {dimension_numbers = #tpu.dot_dimension_numbers<[1], [0], [0], [1], [0, 0, 1, 1], [], []>} : vector<8x36xf32>, vector<36x32xf32>, vector<8x32xf32> -> vector<8x32xf32>
    %cst_34 = arith.constant dense<0.000000e+00> : vector<8xf32>
    %43 = vector.multi_reduction <add>, %42, %cst_34 [1] : vector<8x32xf32> to vector<8xf32>
    %44 = vector.shape_cast %43 : vector<8xf32> to vector<8x1xf32>
    %cst_35 = arith.constant 3.200000e+01 : f32
    %45 = vector.broadcast %cst_35 : f32 to vector<8x1xf32>
    %46 = arith.divf %44, %45 : vector<8x1xf32>
    %47 = vector.broadcast %46 : vector<8x1xf32> to vector<8x32xf32>
    %48 = arith.subf %42, %47 : vector<8x32xf32>
    %49 = arith.mulf %48, %48 : vector<8x32xf32>
    %cst_36 = arith.constant dense<0.000000e+00> : vector<8xf32>
    %50 = vector.multi_reduction <add>, %49, %cst_36 [1] : vector<8x32xf32> to vector<8xf32>
    %51 = vector.shape_cast %50 : vector<8xf32> to vector<8x1xf32>
    %cst_37 = arith.constant 3.200000e+01 : f32
    %52 = vector.broadcast %cst_37 : f32 to vector<8x1xf32>
    %53 = arith.divf %51, %52 : vector<8x1xf32>
    %c0_38 = arith.constant 0 : index
    %c0_39 = arith.constant 0 : index
    %54 = vector.load %arg2[%c0_38, %c0_39] : memref<8x1xf32, #tpu.memory_space<vmem>>, vector<8x1xf32>
    %cst_40 = arith.constant 9.99999974E-6 : f32
    %55 = vector.broadcast %cst_40 : f32 to vector<8x1xf32>
    %56 = arith.addf %53, %55 : vector<8x1xf32>
    %57 = math.rsqrt %56 : vector<8x1xf32>
    %58 = arith.mulf %54, %57 : vector<8x1xf32>
    %59 = vector.broadcast %58 : vector<8x1xf32> to vector<8x32xf32>
    %60 = arith.mulf %48, %59 : vector<8x32xf32>
    %c0_41 = arith.constant 0 : index
    %c0_42 = arith.constant 0 : index
    %61 = vector.load %arg3[%c0_41, %c0_42] : memref<8x1xf32, #tpu.memory_space<vmem>>, vector<8x1xf32>
    %62 = vector.broadcast %61 : vector<8x1xf32> to vector<8x32xf32>
    %63 = arith.addf %60, %62 : vector<8x32xf32>
    %c0_43 = arith.constant 0 : index
    %c0_44 = arith.constant 0 : index
    %64 = vector.load %arg4[%c0_43, %c0_44] : memref<8x32xf32, #tpu.memory_space<vmem>>, vector<8x32xf32>
    tpu.vector_store %arg4[%c0_43, %c0_44], %63 {strides = array<i32>} : memref<8x32xf32, #tpu.memory_space<vmem>>, vector<8x32xf32>,
    return
  }
}

</mosaic_0001>

<llo_original>
// kernel: tpu_custom_call.1
$region0: #{tpu_custom_call.1}
  #allocation0 [shape = 'u32[]', space=smem, size = 0x4, offset = 0x4, fixed_abs, tag = 'smem constant byte address 0x4 - core index']
  #allocation1 [shape = 'u32[144,128]{1,0:T(1,128)}', space=vmem, size = 0x12000, scoped, tag = 'internal scratch']
  #allocation2 [shape = 'f32[36,32]{1,0:T(8,128)}', space=vmem, size = 0x5000, scoped, tag = 'scratch operand']
  %s0 = inlined_call_operand.vmem [shape: f32[2,4,16], index: 0, kind: input, shape index: {}]
  %s1 = inlined_call_operand.vmem [shape: f32[8,36], index: 1, kind: input, shape index: {}]
  %s2 = inlined_call_operand.vmem [shape: f32[8,1], index: 2, kind: input, shape index: {}]
  %s3 = inlined_call_operand.vmem [shape: f32[8,1], index: 3, kind: input, shape index: {}]
  %s4 = inlined_call_operand.hbm [shape: f32[8,32], index: 4, kind: output, shape index: {}]
  %s5 = sld [smem:[#allocation0]]
  $region26: #{tpu_custom_call.1} parent=0
    _
  %s7 = ssub.s32 1, %s5
  %s8 = scalar_select 0, %s7, %s5
  $region1: #{tpu_custom_call.1} parent=0
    #allocation3 [shape = 'u8[4096]{0}', space=vmem, size = 0x1000, scoped, tag = 'output window, operand 0, single buffered']
    #allocation4 [shape = 's32[1]{0}', space=sflag, size = 0x4, scoped, tag = 'scoped memory for tpu_custom_call.1']
    %9 = vsyncpa [#allocation4], 0
    // Predicated region
    $region2: #{tpu_custom_call.1} parent=1 // pred_check
      _
    $region3: #{tpu_custom_call.1} parent=1 // pred_check_branch
      %11 = sbr.rel (0) target = $region5
    $region4: #{tpu_custom_call.1} parent=1 // pred_region
      _
    $region5: #{tpu_custom_call.1} parent=1 // pred_fallthru
      _
    // Predicated region
    $region6: #{tpu_custom_call.1} parent=1 // pred_check
      _
    $region7: #{tpu_custom_call.1} parent=1 // pred_check_branch
      %13 = sbr.rel (0) target = $region9
    $region8: #{tpu_custom_call.1} parent=1 // pred_region
      _
    $region9: #{tpu_custom_call.1} parent=1 // pred_fallthru
      _
    // Predicated region
    $region10: #{tpu_custom_call.1} parent=1 // pred_check
      _
    $region11: #{tpu_custom_call.1} parent=1 // pred_check_branch
      %15 = sbr.rel (0) target = $region13
    $region12: #{tpu_custom_call.1} parent=1 // pred_region
      _
    $region13: #{tpu_custom_call.1} parent=1 // pred_fallthru
      _
    // Predicated region
    $region14: #{tpu_custom_call.1} parent=1 // pred_check
      _
    $region15: #{tpu_custom_call.1} parent=1 // pred_check_branch
      %17 = sbr.rel (0) target = $region17
    $region16: #{tpu_custom_call.1} parent=1 // pred_region
      _
    $region17: #{tpu_custom_call.1} parent=1 // pred_fallthru
      _
    %vm18 = vcmask 261120
    %19 = vst.msk [vmem:[#allocation2] sm:$0xff] %vm18, 0.0
    %20 = vst.msk [vmem:[#allocation2 + $0x8] sm:$0xff] %vm18, 0.0
    %21 = vst.msk [vmem:[#allocation2 + $0x10] sm:$0xff] %vm18, 0.0
    %22 = vst.msk [vmem:[#allocation2 + $0x18] sm:$0xff] %vm18, 0.0
    %vm23 = vcmask 257024
    %24 = vst.msk [vmem:[#allocation2 + $0x20] sm:$0xf] %vm23, 0.0
    %v25 = vld [vmem:[%s0] sm:$0xf]
    %27 = vrot.lane.b32.xlu0 %v25, 4
    %v28 = vpop.permute.xlu0 %27
    %vm30 = vcmask 125984
    %31 = vst.msk [vmem:[#allocation2] sm:$0xf] %vm30, %v28
    %32 = vrot.lane.b32.xlu0 %v25, 3
    %v33 = vpop.permute.xlu0 %32
    %vm35 = vcmask 125976
    %36 = vst.msk [vmem:[#allocation2 + $0x4] sm:$0xf] %vm35, %v33
    %37 = vrot.lane.b32.xlu0 %v25, 2
    %v38 = vpop.permute.xlu0 %37
    %vm40 = vcmask 125968
    %41 = vst.msk [vmem:[#allocation2 + $0x8] sm:$0xf] %vm40, %v38
    %42 = vrot.lane.b32.xlu0 %v25, 1
    %v43 = vpop.permute.xlu0 %42
    %vm45 = vcmask 125960
    %46 = vst.msk [vmem:[#allocation2 + $0xc] sm:$0xf] %vm45, %v43
    %vm47 = vcmask 125952
    %48 = vst.msk [vmem:[#allocation2 + $0x10] sm:$0xf] %vm47, %v25
    %49 = vrot.lane.b32.xlu0 %v25, 127
    %v50 = vpop.permute.xlu0 %49
    %vm52 = vcmask 117760
    %53 = vst.msk [vmem:[#allocation2 + $0x14] sm:$0xf] %vm52, %v50
    %54 = vrot.lane.b32.xlu0 %v25, 126
    %v55 = vpop.permute.xlu0 %54
    %vm57 = vcmask 109568
    %58 = vst.msk [vmem:[#allocation2 + $0x18] sm:$0xf] %vm57, %v55
    %59 = vrot.lane.b32.xlu0 %v25, 125
    %v60 = vpop.permute.xlu0 %59
    %vm62 = vcmask 101376
    %63 = vst.msk [vmem:[#allocation2 + $0x1c] sm:$0xf] %vm62, %v60
    %64 = vrot.lane.b32.xlu0 %v25, 124
    %v65 = vpop.permute.xlu0 %64
    %vm67 = vcmask 93184
    %68 = vst.msk [vmem:[#allocation2 + $0x20] sm:$0xf] %vm67, %v65
    %s69 = scalar_lea.vmem %s0, 4
    %v70 = vld [vmem:[%s69] sm:$0xf]
    %72 = vrot.lane.b32.xlu0 %v70, 20
    %v73 = vpop.permute.xlu0 %72
    %vm75 = vcmask 257184
    %76 = vst.msk [vmem:[#allocation2] sm:$0xf] %vm75, %v73
    %77 = vrot.lane.b32.xlu0 %v70, 19
    %v78 = vpop.permute.xlu0 %77
    %vm80 = vcmask 257176
    %81 = vst.msk [vmem:[#allocation2 + $0x4] sm:$0xf] %vm80, %v78
    %82 = vrot.lane.b32.xlu0 %v70, 18
    %v83 = vpop.permute.xlu0 %82
    %vm85 = vcmask 257168
    %86 = vst.msk [vmem:[#allocation2 + $0x8] sm:$0xf] %vm85, %v83
    %87 = vrot.lane.b32.xlu0 %v70, 17
    %v88 = vpop.permute.xlu0 %87
    %vm90 = vcmask 257160
    %91 = vst.msk [vmem:[#allocation2 + $0xc] sm:$0xf] %vm90, %v88
    %92 = vrot.lane.b32.xlu0 %v70, 16
    %v93 = vpop.permute.xlu0 %92
    %vm95 = vcmask 257152
    %96 = vst.msk [vmem:[#allocation2 + $0x10] sm:$0xf] %vm95, %v93
    %97 = vrot.lane.b32.xlu0 %v70, 15
    %v98 = vpop.permute.xlu0 %97
    %vm100 = vcmask 248960
    %101 = vst.msk [vmem:[#allocation2 + $0x14] sm:$0xf] %vm100, %v98
    %102 = vrot.lane.b32.xlu0 %v70, 14
    %v103 = vpop.permute.xlu0 %102
    %vm105 = vcmask 240768
    %106 = vst.msk [vmem:[#allocation2 + $0x18] sm:$0xf] %vm105, %v103
    %107 = vrot.lane.b32.xlu0 %v70, 13
    %v108 = vpop.permute.xlu0 %107
    %vm110 = vcmask 232576
    %111 = vst.msk [vmem:[#allocation2 + $0x1c] sm:$0xf] %vm110, %v108
    %112 = vrot.lane.b32.xlu0 %v70, 12
    %v113 = vpop.permute.xlu0 %112
    %vm115 = vcmask 224384
    %116 = vst.msk [vmem:[#allocation2 + $0x20] sm:$0xf] %vm115, %v113
    %v117 = vld [vmem:[%s1] sm:$0xff]
    %v118 = vld [vmem:[#allocation2] sm:$0xff]
    %v119 = vld [vmem:[#allocation2 + $0x8] sm:$0xff]
    %v120 = vld [vmem:[#allocation2 + $0x10] sm:$0xff]
    %v121 = vld [vmem:[#allocation2 + $0x18] sm:$0xff]
    %v122 = vld [vmem:[#allocation2 + $0x20] sm:$0xf]
    %vm123 = vcmask 293888
    %v125 = vsel %vm123, %v117, 0
    %vm127 = vcmask 1043456
    %v129 = vsel %vm127, %v122, 0
    %131 = vmatprep.subr.mxu0 0.0
    %132 = vmatpush1.msra.mxu0 %v118
    %133 = vmatprep.subr.mxu0 0.0
    %134 = vmatpush1.msra.mxu0 %v119
    %135 = vmatprep.subr.mxu0 0.0
    %136 = vmatpush1.msra.mxu0 %v120
    %137 = vmatprep.subr.mxu0 0.0
    %138 = vmatpush1.msra.mxu0 %v121
    %139 = vmatprep.subr.mxu0 0.0
    %140 = vmatpush1.msra.mxu0 %v129
    %141 = vmatprep.subr.mxu0 0.0
    %142 = vmatpush1.msra.mxu0 0.0
    %143 = vmatprep.subr.mxu0 0.0
    %144 = vmatpush1.msra.mxu0 0.0
    %145 = vmatprep.subr.mxu0 0.0
    %146 = vmatpush1.msra.mxu0 0.0
    %147 = vmatprep.subr.mxu0 0.0
    %148 = vmatpush1.msra.mxu0 0.0
    %149 = vmatprep.subr.mxu0 0.0
    %150 = vmatpush1.msra.mxu0 0.0
    %151 = vmatprep.subr.mxu0 0.0
    %152 = vmatpush1.msra.mxu0 0.0
    %153 = vmatprep.subr.mxu0 0.0
    %154 = vmatpush1.msra.mxu0 0.0
    %155 = vmatprep.subr.mxu0 0.0
    %156 = vmatpush1.msra.mxu0 0.0
    %157 = vmatprep.subr.mxu0 0.0
    %158 = vmatpush1.msra.mxu0 0.0
    %159 = vmatprep.subr.mxu0 0.0
    %160 = vmatpush1.msra.mxu0 0.0
    %161 = vmatprep.subr.mxu0 0.0
    %162 = vmatpush1.msra.mxu0 0.0
    %163 = vmatprep.subr.mxu0 0.0
    %164 = vmatpush1.msra.mxu0 0.0
    %165 = vmatprep.subr.mxu0 0.0
    %166 = vmatpush1.msra.mxu0 0.0
    %167 = vmatprep.subr.mxu0 0.0
    %168 = vmatpush1.msra.mxu0 0.0
    %169 = vmatprep.subr.mxu0 0.0
    %170 = vmatpush1.msra.mxu0 0.0
    %171 = vmatprep.subr.mxu0 0.0
    %172 = vmatpush1.msra.mxu0 0.0
    %173 = vmatprep.subr.mxu0 0.0
    %174 = vmatpush1.msra.mxu0 0.0
    %175 = vmatprep.subr.mxu0 0.0
    %176 = vmatpush1.msra.mxu0 0.0
    %177 = vmatprep.subr.mxu0 0.0
    %178 = vmatpush1.msra.mxu0 0.0
    %179 = vmatprep.subr.mxu0 0.0
    %180 = vmatpush1.msra.mxu0 0.0
    %181 = vmatprep.subr.mxu0 0.0
    %182 = vmatpush1.msra.mxu0 0.0
    %183 = vmatprep.subr.mxu0 0.0
    %184 = vmatpush1.msra.mxu0 0.0
    %185 = vmatprep.subr.mxu0 0.0
    %186 = vmatpush1.msra.mxu0 0.0
    %187 = vmatprep.subr.mxu0 0.0
    %188 = vmatpush1.msra.mxu0 0.0
    %189 = vmatprep.subr.mxu0 0.0
    %190 = vmatpush1.msra.mxu0 0.0
    %191 = vmatprep.subr.mxu0 0.0
    %192 = vmatpush1.msra.mxu0 0.0
    %193 = vmatprep.subr.mxu0 0.0
    %194 = vmatpush1.msra.mxu0 0.0
    %195 = vmatprep.mubr.f32.mxu0 0.0
    %196 = vmatmul.mubr.f32.gmra.mrb[0].mxu0 %v125
    %v197 = vpop.f32.mrb[0].mxu0
    %v198 = vadd.f32 0.0, %v197
    %v199 = vpop.f32.mrb[0].mxu0
    %200 = vdwg.mxu0
    %v201 = vsel %vm18, %v198, 0.0
    %202 = vadd.xlane.f32.xlu0 %v201
    %v203 = vpop.xlane.xlu0 %202
    %v204 = vrcp.pop 32.0
    %v205 = vmul.f32 %v203, %v204
    %v206 = vsub.f32 %v198, %v205
    %v207 = vmul.f32 %v206, %v206
    %v208 = vsel %vm18, %v207, 0.0
    %209 = vadd.xlane.f32.xlu0 %v208
    %v210 = vpop.xlane.xlu0 %209
    %v211 = vmul.f32 %v210, %v204
    %v212 = vld [vmem:[%s2] sm:$0xff]
    %v213 = vadd.f32 %v211, 1e-05
    %v214 = vrsqrt.pop %v213
    %v215 = vmul.f32 %v212, %v214
    %217 = vset.pattern.permute.xlu0 0
    %218 = vperm.xlu0 %217, %v215
    %v219 = vpop.permute.xlu0 %218
    %v221 = vmul.f32 %v206, %v219
    %v222 = vld [vmem:[%s3] sm:$0xff]
    %224 = vset.pattern.permute.xlu0 0
    %225 = vperm.xlu0 %224, %v222
    %v226 = vpop.permute.xlu0 %225
    %v228 = vadd.f32 %v221, %v226
    %229 = vst.msk [vmem:[#allocation3] sm:$0xff] %vm18, %v228
    // Predicated region
    $region18: #{tpu_custom_call.1} parent=1 // pred_check
      _
    $region19: #{tpu_custom_call.1} parent=1 // pred_check_branch
      %231 = sbr.rel (0) target = $region21
    $region20: #{tpu_custom_call.1} parent=1 // pred_region
      %s233 = ssub.s32 128, 128
      %234 = vsyncadd [#allocation4], %s233
      %s236 = sshll.u32 [#allocation3], 4
      %s237 = int_to_ptr.vmem [resolvable:$true] %s236
      %239 = dma.vmem_to_hbm [thread:$0]  %s237, 128, %s4, [#allocation4]
    $region21: #{tpu_custom_call.1} parent=1 // pred_fallthru
      _
    // Predicated region
    $region22: #{tpu_custom_call.1} parent=1 // pred_check
      _
    $region23: #{tpu_custom_call.1} parent=1 // pred_check_branch
      %241 = sbr.rel (0) target = $region25
    $region24: #{tpu_custom_call.1} parent=1 // pred_region
      %242 = dma.done [#allocation4], 128
    $region25: #{tpu_custom_call.1} parent=1 // pred_fallthru
      _
    %243 = vsyncpa [#allocation4], 1

</llo_original>
